<compile_context>
chip_gen: v5e
topology: v5e:2x2
jax: 0.10.0
libtpu: 0.0.40
codegen_flags: <defaults>
</compile_context>

<pallas_src>
import functools

import jax
import jax.numpy as jnp
from jax import lax
from jax.experimental import pallas as pl
from jax.experimental.pallas import tpu as pltpu


# -----------------------------------------------------------------------------
# Generation-aware VMEM budgeting.
# -----------------------------------------------------------------------------

def _vmem_capacity_bytes():
    """Physical per-core VMEM; conservative 64 MiB (v7x) if the query fails."""
    try:
        cap = int(pltpu.get_tpu_info().vmem_capacity_bytes)
        if cap > 0:
            return cap
    except Exception:
        pass
    return 64 << 20


def _tile_budget_bytes():
    # ~48 MiB of tile + double-buffer on 128-MiB chips (v5e/v6e), 32 MiB on v7x (64 MiB).
    return min(_vmem_capacity_bytes() // 2, 48 << 20)


def _largest_128_divisor(S, limit):
    """Largest multiple of 128 that divides S and is <= max(128, limit); S % 128 == 0."""
    d = max(128, (min(S, limit) // 128) * 128)
    while d > 128 and S % d:
        d -= 128
    return d


def _plan_spatial(S, bytes_per_sp_elem, budget, batch, target_block_bytes=4 << 20):
    """Returns (tile, effective_S).  tile is a 128-multiple dividing effective_S (lane-dense,
    legal block), sized so per-step (in+out) blocks land near target_block_bytes (big DMAs
    >> ~0.35us per-step overhead) while double-buffered blocks stay under `budget`.
    Guarantees >= 2 total grid steps when splittable (keeps both v7x TensorCores busy)."""
    cap = max(128, min(target_block_bytes // bytes_per_sp_elem,
                       budget // (2 * bytes_per_sp_elem)))
    if S % 128:
        if 2 * bytes_per_sp_elem * S <= budget:
            return S, S                      # full-extent block: legal and fits VMEM
        S = ((S + 127) // 128) * 128         # pad to a 128-multiple (caller zero-pads)
    ts = _largest_128_divisor(S, cap)
    if batch * (S // ts) < 2 and ts > 128:   # ensure >= 2 grid steps (v7x megacore)
        ts = _largest_128_divisor(S, ts - 128)
    return ts, S


# -----------------------------------------------------------------------------
# Up-scale: ConvTranspose3d(kernel=(1,2,2), stride=(1,2,2)) as a Pallas matmul.
# kernel == stride => no overlapping taps: one matmul (Cout*4, Cin) @ (Cin, S), S=D*H*W,
# followed by a tap scatter onto the 2x-upsampled H/W grid.
# -----------------------------------------------------------------------------

def _up_matmul_kernel(wt_ref, b_ref, x_ref, o_ref):
    # wt_ref: (Cout*4, Cin)  b_ref: (Cout*4, 1)  x_ref: (1, Cin, ts)  o_ref: (1, Cout*4, ts)
    y = jnp.dot(wt_ref[...], x_ref[0], preferred_element_type=jnp.float32)
    o_ref[0] = (y + b_ref[...]).astype(o_ref.dtype)


def conv_transpose3d_1x2x2_s1x2x2(x2, weight, bias):
    """ConvTranspose3d(kernel=(1,2,2), stride=(1,2,2)) on NCDHW -> (B, Cout, D, 2H, 2W)."""
    B, Cin, D, H, W = x2.shape
    Cout = weight.shape[1]
    N4 = Cout * 4
    S = D * H * W
    itemsize = jnp.dtype(x2.dtype).itemsize

    x_flat = x2.reshape(B, Cin, S)                      # free reshape, native layout
    # PyTorch weight (Cin, Cout, 1, 2, 2) -> (Cout*4, Cin); row idx = co*4 + kh*2 + kw.
    wt = weight.reshape(Cin, N4).T
    b_col = jnp.broadcast_to(bias[:, None, None], (Cout, 4, 1)).reshape(N4, 1)

    budget = _tile_budget_bytes()
    ts, S_eff = _plan_spatial(S, (Cin + N4) * itemsize, budget, batch=B)
    if S_eff != S:
        # TODO(synk): one extra zero-pad pass, only when S is not a 128-multiple AND the
        # full-extent block would blow the VMEM budget; keeps block shapes legal on v7x.
        x_flat = jnp.pad(x_flat, ((0, 0), (0, 0), (0, S_eff - S)))
    grid = (B, S_eff // ts)

    need = (2 * (Cin + N4) * ts + N4 * Cin + N4) * itemsize   # double-buffered in+out
    vmem_limit = int(min(max(2 * need + (4 << 20), 32 << 20), _vmem_capacity_bytes()))

    y = pl.pallas_call(
        _up_matmul_kernel,
        out_shape=jax.ShapeDtypeStruct((B, N4, S_eff), x2.dtype),
        grid_spec=pltpu.PrefetchScalarGridSpec(
            num_scalar_prefetch=0,
            grid=grid,
            in_specs=[
                pl.BlockSpec((N4, Cin), lambda b, t: (0, 0)),
                pl.BlockSpec((N4, 1), lambda b, t: (0, 0)),
                pl.BlockSpec((1, Cin, ts), lambda b, t: (b, 0, t)),
            ],
            out_specs=pl.BlockSpec((1, N4, ts), lambda b, t: (b, 0, t)),
        ),
        compiler_params=pltpu.CompilerParams(
            dimension_semantics=("parallel", "parallel"),
            vmem_limit_bytes=vmem_limit,
        ),
    )(wt, b_col, x_flat)

    if S_eff != S:
        y = y[:, :, :S]

    # Scatter the 4 (kh, kw) taps onto the 2x-upsampled H/W grid.
    # TODO(synk): the kw interleave is a stride-2 lane shuffle; fusing it into the kernel
    # store needs bf16 activations (pack-2xbf16->u32 bitcast trick).  fp32 is kept to match
    # the PyTorch module's numerics, so the interleave remains one XLA transpose pass.
    y = y.reshape(B, Cout, 2, 2, D, H, W)
    y = jnp.transpose(y, (0, 1, 4, 5, 2, 6, 3)).reshape(B, Cout, D, 2 * H, 2 * W)
    return y


def up2_forward(x1, x2, w_up, b_up):
    """Up2.forward: up-scale x2, zero-pad to x1's spatial size, concat on channels."""
    up = conv_transpose3d_1x2x2_s1x2x2(x2, w_up, b_up)
    dZ = x1.shape[2] - up.shape[2]
    dY = x1.shape[3] - up.shape[3]
    dX = x1.shape[4] - up.shape[4]
    # TODO(synk): negative diffs (cropping) are not handled; UNet shapes keep them >= 0.
    up = jnp.pad(up, ((0, 0), (0, 0), (dZ // 2, dZ - dZ // 2),
                      (dY // 2, dY - dY // 2), (dX // 2, dX - dX // 2)))
    # Single pad + concat expression (instead of zeros + 2x dynamic_update_slice) so XLA
    # emits one copy of each operand into the concat buffer with the pad fused in.
    return jnp.concatenate([up, x1.astype(up.dtype)], axis=1)


# -----------------------------------------------------------------------------
# Fused GroupNorm (affine) + ReLU.  Blocks are (1, Cc, S): channels on sublanes
# (dense for C >= 8), spatial lane-dense; one grid step per (batch, channel-chunk)
# where a chunk is a set of whole groups sized to fit the VMEM budget.
# -----------------------------------------------------------------------------

def _gn_relu_kernel(x_ref, m_ref, g_ref, b_ref, o_ref, *, eps, inv_n, fold):
    # x_ref: (1, Cc, S) -- whole channel-chunk.  m_ref: (Cc, Cc) chunk-local group-
    # membership matrix pre-scaled by 1/(Cg*S).  g_ref / b_ref: (Cc, 1) affine params.
    x = x_ref[0].astype(jnp.float32)
    ch_sum = jnp.sum(x, axis=1, keepdims=True)                        # (Cc, 1)
    if fold:   # Cg > 1: fold per-channel sums into per-group means via a tiny matvec
        mean = jnp.dot(m_ref[...], ch_sum, preferred_element_type=jnp.float32)
    else:      # Cg == 1: per-channel stats ARE the group stats
        mean = ch_sum * inv_n
    cen = x - mean
    ch_sq = jnp.sum(cen * cen, axis=1, keepdims=True)                 # (Cc, 1)
    if fold:
        var = jnp.dot(m_ref[...], ch_sq, preferred_element_type=jnp.float32)
    else:
        var = ch_sq * inv_n
    inv = lax.rsqrt(var + eps)
    y = cen * (inv * g_ref[...]) + b_ref[...]
    o_ref[0] = jnp.maximum(y, 0.0).astype(o_ref.dtype)


def _gn_relu_xla(x, gamma, beta, G, eps=1e-5):
    """Pure-XLA GroupNorm+ReLU (reference and VMEM-overflow fallback)."""
    B, C = x.shape[:2]
    xg = x.reshape(B, G, -1)
    mean = xg.mean(axis=2, keepdims=True)
    var = ((xg - mean) ** 2).mean(axis=2, keepdims=True)
    xn = ((xg - mean) * lax.rsqrt(var + eps)).reshape(x.shape)
    y = xn * gamma[None, :, None, None, None] + beta[None, :, None, None, None]
    return jnp.maximum(y, 0.0)


def group_norm_relu(x, gamma, beta, num_groups, eps=1e-5):
    B, C, D, H, W = x.shape
    G = num_groups
    Cg = C // G
    S = D * H * W
    itemsize = jnp.dtype(x.dtype).itemsize
    cap = _vmem_capacity_bytes()
    budget = min(cap // 2, 48 << 20)

    def chunk_bytes(gc):   # double-buffered in+out blocks + params + one f32 temp slab
        cc = gc * Cg
        return 2 * 2 * cc * S * itemsize + (cc * cc + 2 * cc + cc * S) * 4

    # Whole groups per chunk; the chunk channel count must be a multiple of 8 (sublane
    # tile) or the full C so the BlockSpec stays legal.  Largest chunk under the budget.
    gc = None
    for g in range(G, 0, -1):
        if G % g:
            continue
        cc = g * Cg
        if cc != C and cc % 8:
            continue
        if chunk_bytes(g) <= budget:
            gc = g
            break
    if gc is None:
        # TODO(synk): spatially-tiled two-pass GroupNorm (stats pass + normalize pass) not
        # implemented; fall back to XLA when even one group exceeds the VMEM budget.
        return _gn_relu_xla(x, gamma, beta, G, eps)

    Cc = gc * Cg
    n_chunks = C // Cc
    x3 = x.reshape(B, C, S)
    # Chunk-local group membership (same block-diagonal pattern for every chunk),
    # pre-scaled by 1/(Cg*S) so the in-kernel matvec yields group means directly.
    lid = jnp.arange(Cc) // Cg
    m = (lid[:, None] == lid[None, :]).astype(jnp.float32) / float(Cg * S)
    gam = gamma.reshape(C, 1).astype(jnp.float32)
    bet = beta.reshape(C, 1).astype(jnp.float32)

    vmem_limit = int(min(max(2 * chunk_bytes(gc), 16 << 20), cap))

    y = pl.pallas_call(
        functools.partial(_gn_relu_kernel, eps=eps, inv_n=1.0 / (Cg * S), fold=(Cg > 1)),
        out_shape=jax.ShapeDtypeStruct((B, C, S), x.dtype),
        grid_spec=pltpu.PrefetchScalarGridSpec(
            num_scalar_prefetch=0,
            grid=(B, n_chunks),
            in_specs=[
                pl.BlockSpec((1, Cc, S), lambda b, g: (b, g, 0)),
                pl.BlockSpec((Cc, Cc), lambda b, g: (0, 0)),
                pl.BlockSpec((Cc, 1), lambda b, g: (g, 0)),
                pl.BlockSpec((Cc, 1), lambda b, g: (g, 0)),
            ],
            out_specs=pl.BlockSpec((1, Cc, S), lambda b, g: (b, g, 0)),
        ),
        compiler_params=pltpu.CompilerParams(
            dimension_semantics=("parallel", "parallel"),
            vmem_limit_bytes=vmem_limit,
        ),
    )(x3, m, gam, bet)
    return y.reshape(B, C, D, H, W)


# -----------------------------------------------------------------------------
# DoubleConv2 (reduce=False) + full UpLayer2 forward.
# -----------------------------------------------------------------------------

def _conv3d_nchw(x, w, b, padding):
    # The 3x3x3 / 1x3x3 Conv3d layers use XLA's native conv (MXU-backed).
    # TODO(synk): reviewer suggested channels-last (NDHWC) convs; at these tiny channel
    # counts that would starve the Pallas GN kernel's lane dim and force explicit
    # transposes around it, so the logical layout stays NCDHW and XLA picks conv layouts.
    dn = lax.conv_dimension_numbers(x.shape, w.shape, ("NCDHW", "OIDHW", "NCDHW"))
    y = lax.conv_general_dilated(x, w, window_strides=(1, 1, 1), padding=padding,
                                 dimension_numbers=dn)
    return y + b[None, :, None, None, None]


def up_layer2_forward(x1, x2, params, num_groups):
    """UpLayer2.forward(x1, x2) = DoubleConv2(reduce=False)(Up2(x1, x2))."""
    a = up2_forward(x1, x2, params["w_up"], params["b_up"])
    h = _conv3d_nchw(a, params["w1"], params["b1"], ((1, 1), (1, 1), (1, 1)))
    h = group_norm_relu(h, params["g1"], params["be1"], num_groups)
    h = _conv3d_nchw(h, params["w2"], params["b2"], ((0, 0), (1, 1), (1, 1)))
    h = group_norm_relu(h, params["g2"], params["be2"], num_groups)
    return h


# -----------------------------------------------------------------------------
# Pure-JAX/XLA reference (no Pallas) for validation.
# -----------------------------------------------------------------------------

def _ref_up2(x1, x2, w_up, b_up):
    B, Cin, D, H, W = x2.shape
    Cout = w_up.shape[1]
    up = jnp.einsum("bcdhw,coij->bodhiwj", x2, w_up[:, :, 0])
    up = up.reshape(B, Cout, D, 2 * H, 2 * W) + b_up[None, :, None, None, None]
    dZ = x1.shape[2] - up.shape[2]
    dY = x1.shape[3] - up.shape[3]
    dX = x1.shape[4] - up.shape[4]
    up = jnp.pad(up, ((0, 0), (0, 0), (dZ // 2, dZ - dZ // 2),
                      (dY // 2, dY - dY // 2), (dX // 2, dX - dX // 2)))
    return jnp.concatenate([up, x1], axis=1)


def _ref_forward(x1, x2, p, G):
    a = _ref_up2(x1, x2, p["w_up"], p["b_up"])
    h = _conv3d_nchw(a, p["w1"], p["b1"], ((1, 1), (1, 1), (1, 1)))
    h = _gn_relu_xla(h, p["g1"], p["be1"], G)
    h = _conv3d_nchw(h, p["w2"], p["b2"], ((0, 0), (1, 1), (1, 1)))
    h = _gn_relu_xla(h, p["g2"], p["be2"], G)
    return h


if __name__ == "__main__":
    key = jax.random.PRNGKey(0)
    ks = jax.random.split(key, 12)

    in_ch, out_ch = 8, 4
    num_groups = min(16, out_ch)        # DoubleConv2 overrides num_groups like this
    B, D, H, W = 2, 4, 8, 8             # x2 (coarse feature map)
    # x1 (skip connection) slightly larger so the pad path is exercised;
    # its channel count is in_ch - out_ch so the concat has in_ch channels.
    x1 = jax.random.normal(ks[0], (B, in_ch - out_ch, D + 1, 2 * H + 1, 2 * W + 2), jnp.float32)
    x2 = jax.random.normal(ks[1], (B, in_ch, D, H, W), jnp.float32)

    params = {
        "w_up": 0.1 * jax.random.normal(ks[2], (in_ch, out_ch, 1, 2, 2), jnp.float32),
        "b_up": 0.01 * jax.random.normal(ks[3], (out_ch,), jnp.float32),
        "w1": 0.1 * jax.random.normal(ks[4], (out_ch, in_ch, 3, 3, 3), jnp.float32),
        "b1": 0.01 * jax.random.normal(ks[5], (out_ch,), jnp.float32),
        "g1": 1.0 + 0.1 * jax.random.normal(ks[6], (out_ch,), jnp.float32),
        "be1": 0.01 * jax.random.normal(ks[7], (out_ch,), jnp.float32),
        "w2": 0.1 * jax.random.normal(ks[8], (out_ch, out_ch, 1, 3, 3), jnp.float32),
        "b2": 0.01 * jax.random.normal(ks[9], (out_ch,), jnp.float32),
        "g2": 1.0 + 0.1 * jax.random.normal(ks[10], (out_ch,), jnp.float32),
        "be2": 0.01 * jax.random.normal(ks[11], (out_ch,), jnp.float32),
    }

    fwd = jax.jit(functools.partial(up_layer2_forward, num_groups=num_groups))
    out = jax.block_until_ready(fwd(x1, x2, params))

    # Validate the Pallas up-scale path (matmul kernel + tap scatter + pad/concat)...
    a = jax.block_until_ready(jax.jit(up2_forward)(x1, x2, params["w_up"], params["b_up"]))
    a_ref = _ref_up2(x1, x2, params["w_up"], params["b_up"])
    assert a.shape == a_ref.shape, (a.shape, a_ref.shape)
    assert jnp.allclose(a, a_ref, atol=1e-4, rtol=1e-4), float(jnp.max(jnp.abs(a - a_ref)))

    # ...and the full UpLayer2 forward (incl. the fused GroupNorm+ReLU Pallas kernel).
    ref = _ref_forward(x1, x2, params, num_groups)
    assert out.shape == (B, out_ch, D + 1, 2 * H + 1, 2 * W + 2), out.shape
    assert jnp.allclose(out, ref, atol=2e-3, rtol=2e-3), float(jnp.max(jnp.abs(out - ref)))
    print("KERNEL_OK")
</pallas_src>

<mosaic_0001>
module attributes {stable_mosaic.version = 11 : i64} {
  func.func @_up_matmul_kernel(%arg0: i32, %arg1: i32, %arg2: memref<16x8xf32, #tpu.memory_space<vmem>>, %arg3: memref<16x1xf32, #tpu.memory_space<vmem>>, %arg4: memref<1x8x256xf32, #tpu.memory_space<vmem>>, %arg5: memref<1x16x256xf32, #tpu.memory_space<vmem>>) attributes {dimension_semantics = [#tpu.dimension_semantics<parallel>, #tpu.dimension_semantics<parallel>], iteration_bounds = array<i64: 2, 1>, scalar_prefetch = 0 : i64, scratch_operands = 0 : i64, tpu.core_type = #tpu.core_type<tc>, window_params = [{pipeline_mode = #tpu.pipeline_mode<synchronous>, transform_indices = @transform_0, window_bounds = array<i64: 16, 8>}, {pipeline_mode = #tpu.pipeline_mode<synchronous>, transform_indices = @transform_1, window_bounds = array<i64: 16, 1>}, {transform_indices = @transform_2, window_bounds = array<i64: 1, 8, 256>}, {transform_indices = @transform_3, window_bounds = array<i64: 1, 16, 256>}]} {
    %c0 = arith.constant 0 : index
    %c0_0 = arith.constant 0 : index
    %0 = vector.load %arg2[%c0, %c0_0] : memref<16x8xf32, #tpu.memory_space<vmem>>, vector<16x8xf32>
    %c0_1 = arith.constant 0 : index
    %c0_2 = arith.constant 0 : index
    %c0_3 = arith.constant 0 : index
    %1 = vector.load %arg4[%c0_1, %c0_2, %c0_3] : memref<1x8x256xf32, #tpu.memory_space<vmem>>, vector<1x8x256xf32>
    %2 = vector.shape_cast %1 : vector<1x8x256xf32> to vector<8x256xf32>
    %cst = arith.constant dense<0.000000e+00> : vector<16x256xf32>
    %3 = tpu.matmul %0, %2, %cst {dimension_numbers = #tpu.dot_dimension_numbers<[1], [0], [0], [1], [0, 0, 1, 1], [], []>} : vector<16x8xf32>, vector<8x256xf32>, vector<16x256xf32> -> vector<16x256xf32>
    %c0_4 = arith.constant 0 : index
    %c0_5 = arith.constant 0 : index
    %4 = vector.load %arg3[%c0_4, %c0_5] : memref<16x1xf32, #tpu.memory_space<vmem>>, vector<16x1xf32>
    %5 = vector.broadcast %4 : vector<16x1xf32> to vector<16x256xf32>
    %6 = arith.addf %3, %5 : vector<16x256xf32>
    %c0_6 = arith.constant 0 : index
    %c0_7 = arith.constant 0 : index
    %c0_8 = arith.constant 0 : index
    %7 = vector.load %arg5[%c0_6, %c0_7, %c0_8] : memref<1x16x256xf32, #tpu.memory_space<vmem>>, vector<1x16x256xf32>
    %8 = vector.shape_cast %7 : vector<1x16x256xf32> to vector<16x256xf32>
    %9 = vector.shape_cast %6 : vector<16x256xf32> to vector<1x16x256xf32>
    tpu.vector_store %arg5[%c0_6, %c0_7, %c0_8], %9 {strides = array<i32>} : memref<1x16x256xf32, #tpu.memory_space<vmem>>, vector<1x16x256xf32>,
    return
  }
  func.func @transform_0(%arg0: i32, %arg1: i32) -> (i32, i32) {
    %c0_i32 = arith.constant 0 : i32
    %c0_i32_0 = arith.constant 0 : i32
    %c0_i32_1 = arith.constant 0 : i32
    return %c0_i32, %c0_i32_0 : i32, i32
  }
  func.func @transform_1(%arg0: i32, %arg1: i32) -> (i32, i32) {
    %c0_i32 = arith.constant 0 : i32
    %c0_i32_0 = arith.constant 0 : i32
    %c0_i32_1 = arith.constant 0 : i32
    return %c0_i32, %c0_i32_0 : i32, i32
  }
  func.func @transform_2(%arg0: i32, %arg1: i32) -> (i32, i32, i32) {
    %c0_i32 = arith.constant 0 : i32
    %c0_i32_0 = arith.constant 0 : i32
    return %arg0, %c0_i32, %arg1 : i32, i32, i32
  }
  func.func @transform_3(%arg0: i32, %arg1: i32) -> (i32, i32, i32) {
    %c0_i32 = arith.constant 0 : i32
    %c0_i32_0 = arith.constant 0 : i32
    return %arg0, %c0_i32, %arg1 : i32, i32, i32
  }
}

module attributes {stable_mosaic.version = 11 : i64} {
  func.func @_gn_relu_kernel(%arg0: i32, %arg1: i32, %arg2: memref<1x4x1530xf32, #tpu.memory_space<vmem>>, %arg3: memref<4x4xf32, #tpu.memory_space<vmem>>, %arg4: memref<4x1xf32, #tpu.memory_space<vmem>>, %arg5: memref<4x1xf32, #tpu.memory_space<vmem>>, %arg6: memref<1x4x1530xf32, #tpu.memory_space<vmem>>) attributes {dimension_semantics = [#tpu.dimension_semantics<parallel>, #tpu.dimension_semantics<parallel>], iteration_bounds = array<i64: 2, 1>, scalar_prefetch = 0 : i64, scratch_operands = 0 : i64, tpu.core_type = #tpu.core_type<tc>, window_params = [{transform_indices = @transform_0, window_bounds = array<i64: 1, 4, 1530>}, {pipeline_mode = #tpu.pipeline_mode<synchronous>, transform_indices = @transform_1, window_bounds = array<i64: 4, 4>}, {transform_indices = @transform_2, window_bounds = array<i64: 4, 1>}, {transform_indices = @transform_3, window_bounds = array<i64: 4, 1>}, {transform_indices = @transform_4, window_bounds = array<i64: 1, 4, 1530>}]} {
    %c0 = arith.constant 0 : index
    %c0_0 = arith.constant 0 : index
    %c0_1 = arith.constant 0 : index
    %0 = vector.load %arg2[%c0, %c0_0, %c0_1] : memref<1x4x1530xf32, #tpu.memory_space<vmem>>, vector<1x4x1530xf32>
    %1 = vector.shape_cast %0 : vector<1x4x1530xf32> to vector<4x1530xf32>
    %cst = arith.constant dense<0.000000e+00> : vector<4xf32>
    %2 = vector.multi_reduction <add>, %1, %cst [1] : vector<4x1530xf32> to vector<4xf32>
    %3 = vector.shape_cast %2 : vector<4xf32> to vector<4x1xf32>
    %cst_2 = arith.constant 6.5359479E-4 : f32
    %4 = vector.broadcast %cst_2 : f32 to vector<4x1xf32>
    %5 = arith.mulf %3, %4 : vector<4x1xf32>
    %6 = vector.broadcast %5 : vector<4x1xf32> to vector<4x1530xf32>
    %7 = arith.subf %1, %6 : vector<4x1530xf32>
    %8 = arith.mulf %7, %7 : vector<4x1530xf32>
    %cst_3 = arith.constant dense<0.000000e+00> : vector<4xf32>
    %9 = vector.multi_reduction <add>, %8, %cst_3 [1] : vector<4x1530xf32> to vector<4xf32>
    %10 = vector.shape_cast %9 : vector<4xf32> to vector<4x1xf32>
    %cst_4 = arith.constant 6.5359479E-4 : f32
    %11 = vector.broadcast %cst_4 : f32 to vector<4x1xf32>
    %12 = arith.mulf %10, %11 : vector<4x1xf32>
    %cst_5 = arith.constant 9.99999974E-6 : f32
    %13 = vector.broadcast %cst_5 : f32 to vector<4x1xf32>
    %14 = arith.addf %12, %13 : vector<4x1xf32>
    %15 = math.rsqrt %14 : vector<4x1xf32>
    %c0_6 = arith.constant 0 : index
    %c0_7 = arith.constant 0 : index
    %16 = vector.load %arg4[%c0_6, %c0_7] : memref<4x1xf32, #tpu.memory_space<vmem>>, vector<4x1xf32>
    %17 = arith.mulf %15, %16 : vector<4x1xf32>
    %18 = vector.broadcast %17 : vector<4x1xf32> to vector<4x1530xf32>
    %19 = arith.mulf %7, %18 : vector<4x1530xf32>
    %c0_8 = arith.constant 0 : index
    %c0_9 = arith.constant 0 : index
    %20 = vector.load %arg5[%c0_8, %c0_9] : memref<4x1xf32, #tpu.memory_space<vmem>>, vector<4x1xf32>
    %21 = vector.broadcast %20 : vector<4x1xf32> to vector<4x1530xf32>
    %22 = arith.addf %19, %21 : vector<4x1530xf32>
    %cst_10 = arith.constant 0.000000e+00 : f32
    %23 = vector.broadcast %cst_10 : f32 to vector<4x1530xf32>
    %24 = arith.maximumf %22, %23 : vector<4x1530xf32>
    %c0_11 = arith.constant 0 : index
    %c0_12 = arith.constant 0 : index
    %c0_13 = arith.constant 0 : index
    %25 = vector.load %arg6[%c0_11, %c0_12, %c0_13] : memref<1x4x1530xf32, #tpu.memory_space<vmem>>, vector<1x4x1530xf32>
    %26 = vector.shape_cast %25 : vector<1x4x1530xf32> to vector<4x1530xf32>
    %27 = vector.shape_cast %24 : vector<4x1530xf32> to vector<1x4x1530xf32>
    tpu.vector_store %arg6[%c0_11, %c0_12, %c0_13], %27 {strides = array<i32>} : memref<1x4x1530xf32, #tpu.memory_space<vmem>>, vector<1x4x1530xf32>,
    return
  }
  func.func @transform_0(%arg0: i32, %arg1: i32) -> (i32, i32, i32) {
    %c0_i32 = arith.constant 0 : i32
    %c0_i32_0 = arith.constant 0 : i32
    return %arg0, %arg1, %c0_i32 : i32, i32, i32
  }
  func.func @transform_1(%arg0: i32, %arg1: i32) -> (i32, i32) {
    %c0_i32 = arith.constant 0 : i32
    %c0_i32_0 = arith.constant 0 : i32
    %c0_i32_1 = arith.constant 0 : i32
    return %c0_i32, %c0_i32_0 : i32, i32
  }
  func.func @transform_2(%arg0: i32, %arg1: i32) -> (i32, i32) {
    %c0_i32 = arith.constant 0 : i32
    %c0_i32_0 = arith.constant 0 : i32
    return %arg1, %c0_i32 : i32, i32
  }
  func.func @transform_3(%arg0: i32, %arg1: i32) -> (i32, i32) {
    %c0_i32 = arith.constant 0 : i32
    %c0_i32_0 = arith.constant 0 : i32
    return %arg1, %c0_i32 : i32, i32
  }
  func.func @transform_4(%arg0: i32, %arg1: i32) -> (i32, i32, i32) {
    %c0_i32 = arith.constant 0 : i32
    %c0_i32_0 = arith.constant 0 : i32
    return %arg0, %arg1, %c0_i32 : i32, i32, i32
  }
}

</mosaic_0001>

<llo_original>
// kernel: up_layer2_forward.3
$region0: #{up_layer2_forward.3}
  #allocation0 [shape = 'u32[]', space=smem, size = 0x4, offset = 0x4, fixed_abs, tag = 'smem constant byte address 0x4 - core index']
  #allocation1 [shape = 'u32[72,128]{1,0:T(1,128)}', space=vmem, size = 0x9000, scoped, tag = 'internal scratch']
  %s0 = inlined_call_operand.hbm [shape: f32[16,8], index: 0, kind: input, shape index: {}]
  %s1 = inlined_call_operand.vmem [shape: f32[16,1], index: 1, kind: input, shape index: {}]
  %s2 = inlined_call_operand.vmem [shape: f32[2,8,256], index: 2, kind: input, shape index: {}]
  %s3 = inlined_call_operand.vmem [shape: f32[2,16,256], index: 3, kind: output, shape index: {}]
  %s4 = sld [smem:[#allocation0]]
  $region49: #{up_layer2_forward.3} parent=0
    _
  %s6 = ssub.s32 1, %s4
  %s7 = scalar_select 0, %s6, %s4
  $region1: #{up_layer2_forward.3} parent=0
    #allocation2 [shape = 'u8[8192]{0}', space=vmem, size = 0x2000, scoped, tag = 'input window, operand 0, single buffered']
    #allocation3 [shape = 's32[2]{0}', space=sflag, size = 0x8, scoped, tag = 'scoped memory for up_layer2_forward.3']
    %8 = vsyncpa [#allocation3], 0
    loop: start=0, step=1, limit=4
    $region2: #{up_layer2_forward.3} parent=1 // loop_pre_header
      _
    $region3: #{up_layer2_forward.3} parent=1 // loop_header
      %s10 = sphi 0, %s14
      %p11 = scmp.ge.s32.totalorder %s10, 4
      %s17 = sphi 0, %s29
      %s18 = sphi 0, %s25
      %s19 = sphi 0, %s17
      %s20 = sphi 0, %s18
      %s21 = sphi 0, %s19
      %s22 = sphi 0, %s20
      %s30 = sphi 0, %s30
      %s32 = sphi 0, %s30
      %s33 = sphi 0, %s32
      %s47 = sphi 0, %s33
      %s51 = sphi 0, %s51
      %s53 = sphi 0, %s51
      %s54 = sphi 0, %s53
      %s68 = sphi 0, %s54
      %s76 = sphi 0, %s78
      %s79 = sphi 0, %s76
      %s80 = sphi 0, %s79
      %s96 = sphi 0, %s80
      %s104 = sphi 0, %s106
      %s107 = sphi 0, %s104
      %s108 = sphi 0, %s107
      %s124 = sphi 0, %s108
    $region4: #{up_layer2_forward.3} parent=1 // loop_header_branch
      %13 = sbr.rel (%p11) target = $region8
    $region5: #{up_layer2_forward.3} parent=1 // loop_body
      %s15 = ssub.s32 %s10, 1
      %s16 = ssub.s32 %s10, 2
      %s23 = sadd.s32 1, %s18
      %p24 = scmp.ge.s32.totalorder %s23, 1
      %s25 = scalar_select %p24, 0, %s23
      %s26 = sadd.s32 1, %s17
      %s27 = scalar_select %p24, %s26, %s17
      %p28 = scmp.ge.s32.totalorder %s27, 2
      %s29 = scalar_select %p28, 0, %s27
      %s31 = sadd.s32 %s30, 1
      %p34 = scmp.eq.s32.totalorder %s10, 1
      %p35 = scmp.ne.s32.totalorder %s30, %s32
      %p36 = scmp.eq.s32.totalorder %s10, 0
      %p37 = por %p35, %p36
      %p38 = scmp.ne.s32.totalorder %s30, %s32
      %p39 = scmp.eq.s32.totalorder %s15, 1
      %p40 = por %p38, %p39
      %p41 = scmp.ne.s32.totalorder %s32, %s33
      %p42 = scmp.eq.s32.totalorder %s15, 0
      %p43 = por %p41, %p42
      %p44 = scmp.ne.s32.totalorder %s32, %s33
      %p45 = scmp.eq.s32.totalorder %s16, 1
      %p46 = por %p44, %p45
      %p48 = scmp.ne.s32.totalorder %s33, %s47
      %p49 = scmp.eq.s32.totalorder %s16, 0
      %p50 = por %p48, %p49
      %s52 = sadd.s32 %s51, 1
      %p55 = scmp.eq.s32.totalorder %s10, 1
      %p56 = scmp.ne.s32.totalorder %s51, %s53
      %p57 = scmp.eq.s32.totalorder %s10, 0
      %p58 = por %p56, %p57
      %p59 = scmp.ne.s32.totalorder %s51, %s53
      %p60 = scmp.eq.s32.totalorder %s15, 1
      %p61 = por %p59, %p60
      %p62 = scmp.ne.s32.totalorder %s53, %s54
      %p63 = scmp.eq.s32.totalorder %s15, 0
      %p64 = por %p62, %p63
      %p65 = scmp.ne.s32.totalorder %s53, %s54
      %p66 = scmp.eq.s32.totalorder %s16, 1
      %p67 = por %p65, %p66
      %p69 = scmp.ne.s32.totalorder %s54, %s68
      %p70 = scmp.eq.s32.totalorder %s16, 0
      %p71 = por %p69, %p70
      %s72 = ssub.s32 %s17, %s29
      %s73 = ssub.s32 %s18, %s25
      %s74 = sor.u32 %s72, %s73
      %p75 = scmp.eq.s32.totalorder %s74, 0
      %s77 = sadd.s32 %s76, 1
      %s78 = scalar_select %p75, %s76, %s77
      %p81 = pneg %p75
      %p82 = scmp.eq.s32.totalorder %s10, 1
      %p83 = por %p81, %p82
      %p84 = scmp.ne.s32.totalorder %s76, %s79
      %p85 = scmp.eq.s32.totalorder %s10, 0
      %p86 = por %p84, %p85
      %p87 = scmp.ne.s32.totalorder %s76, %s79
      %p88 = scmp.eq.s32.totalorder %s15, 1
      %p89 = por %p87, %p88
      %p90 = scmp.ne.s32.totalorder %s79, %s80
      %p91 = scmp.eq.s32.totalorder %s15, 0
      %p92 = por %p90, %p91
      %p93 = scmp.ne.s32.totalorder %s79, %s80
      %p94 = scmp.eq.s32.totalorder %s16, 1
      %p95 = por %p93, %p94
      %p97 = scmp.ne.s32.totalorder %s80, %s96
      %p98 = scmp.eq.s32.totalorder %s16, 0
      %p99 = por %p97, %p98
      %s100 = ssub.s32 %s17, %s29
      %s101 = ssub.s32 %s18, %s25
      %s102 = sor.u32 %s100, %s101
      %p103 = scmp.eq.s32.totalorder %s102, 0
      %s105 = sadd.s32 %s104, 1
      %s106 = scalar_select %p103, %s104, %s105
      %p109 = pneg %p103
      %p110 = scmp.eq.s32.totalorder %s10, 1
      %p111 = por %p109, %p110
      %p112 = scmp.ne.s32.totalorder %s104, %s107
      %p113 = scmp.eq.s32.totalorder %s10, 0
      %p114 = por %p112, %p113
      %p115 = scmp.ne.s32.totalorder %s104, %s107
      %p116 = scmp.eq.s32.totalorder %s15, 1
      %p117 = por %p115, %p116
      %p118 = scmp.ne.s32.totalorder %s107, %s108
      %p119 = scmp.eq.s32.totalorder %s15, 0
      %p120 = por %p118, %p119
      %p121 = scmp.ne.s32.totalorder %s107, %s108
      %p122 = scmp.eq.s32.totalorder %s16, 1
      %p123 = por %p121, %p122
      %p125 = scmp.ne.s32.totalorder %s108, %s124
      %p126 = scmp.eq.s32.totalorder %s16, 0
      %p127 = por %p125, %p126
      %p128 = scmp.le.s32.totalorder 1, %s10
      %p129 = scmp.lt.s32.totalorder %s10, 3
      %p130 = pnand %p128, %p129
      %p131 = pneg %p130
      // Predicated region
      $region9: #{up_layer2_forward.3} parent=5 // pred_check
        _
      $region10: #{up_layer2_forward.3} parent=5 // pred_check_branch
        %133 = sbr.rel (%p130) target = $region12
      $region11: #{up_layer2_forward.3} parent=5 // pred_region
        %s134 = ssub.s32 %s10, 1
        // Predicated region
        $region13: #{up_layer2_forward.3} parent=11 // pred_check
          %p135 = pneg %p43
        $region14: #{up_layer2_forward.3} parent=11 // pred_check_branch
          %137 = sbr.rel (%p135) target = $region16
        $region15: #{up_layer2_forward.3} parent=11 // pred_region
          %139 = vsyncadd [#allocation3], 0
          %s140 = sshll.u32 %s0, 4
          %s141 = int_to_ptr.hbm [resolvable:$true] %s140
          %s142 = sshll.u32 [#allocation2], 4
          %s143 = int_to_ptr.vmem [resolvable:$true] %s142
          %148 = dma.hbm_to_vmem [thread:$0]  %s141, 256, %s143, [#allocation3], 128, 128, 8
        $region16: #{up_layer2_forward.3} parent=11 // pred_fallthru
          _
        // Predicated region
        $region17: #{up_layer2_forward.3} parent=11 // pred_check
          %p149 = pneg %p64
        $region18: #{up_layer2_forward.3} parent=11 // pred_check_branch
          %151 = sbr.rel (%p149) target = $region20
        $region19: #{up_layer2_forward.3} parent=11 // pred_region
          _
        $region20: #{up_layer2_forward.3} parent=11 // pred_fallthru
          _
      $region12: #{up_layer2_forward.3} parent=5 // pred_fallthru
        _
      %p152 = scmp.lt.s32.totalorder %s10, 2
      // Predicated region
      $region21: #{up_layer2_forward.3} parent=5 // pred_check
        %p153 = pneg %p152
      $region22: #{up_layer2_forward.3} parent=5 // pred_check_branch
        %155 = sbr.rel (%p153) target = $region24
      $region23: #{up_layer2_forward.3} parent=5 // pred_region
        // Predicated region
        $region25: #{up_layer2_forward.3} parent=23 // pred_check
          %p156 = pneg %p86
        $region26: #{up_layer2_forward.3} parent=23 // pred_check_branch
          %158 = sbr.rel (%p156) target = $region28
        $region27: #{up_layer2_forward.3} parent=23 // pred_region
          %s159 = smul.u32 2, %s18
          %p160 = scmp.lt.s32.totalorder %s17, 1
          %s161 = scalar_select %p160, %s17, 1
          %p162 = scmp.lt.s32.totalorder %s159, 1
          %s163 = scalar_select %p162, %s159, 1
          %s164 = smul.addr %s161, 2
          %s165 = sadd.s32 %s163, %s164
          %s166 = smul.addr %s165, 8
          %s167 = scalar_lea.vmem %s2, %s166
          %s168 = smul.u32 2, %s18
        $region28: #{up_layer2_forward.3} parent=23 // pred_fallthru
          _
      $region24: #{up_layer2_forward.3} parent=5 // pred_fallthru
        _
      %p169 = scmp.le.s32.totalorder 1, %s10
      %p170 = scmp.lt.s32.totalorder %s10, 3
      %p171 = pnand %p169, %p170
      %p172 = pneg %p171
      // Predicated region
      $region29: #{up_layer2_forward.3} parent=5 // pred_check
        _
      $region30: #{up_layer2_forward.3} parent=5 // pred_check_branch
        %174 = sbr.rel (%p171) target = $region32
      $region31: #{up_layer2_forward.3} parent=5 // pred_region
        %s175 = ssub.s32 %s10, 1
        // Predicated region
        $region33: #{up_layer2_forward.3} parent=31 // pred_check
          %p176 = pneg %p43
        $region34: #{up_layer2_forward.3} parent=31 // pred_check_branch
          %178 = sbr.rel (%p176) target = $region36
        $region35: #{up_layer2_forward.3} parent=31 // pred_region
          %180 = dma.done [#allocation3], 256
        $region36: #{up_layer2_forward.3} parent=31 // pred_fallthru
          _
        %p181 = pneg %p43
        %p182 = pneg %p40
        %p183 = pneg %p64
        %p184 = pneg %p61
        %s185 = smul.u32 2, %s20
        %p186 = scmp.lt.s32.totalorder %s19, 1
        %s187 = scalar_select %p186, %s19, 1
        %p188 = scmp.lt.s32.totalorder %s185, 1
        %s189 = scalar_select %p188, %s185, 1
        %s190 = smul.addr %s187, 2
        %s191 = sadd.s32 %s189, %s190
        %s192 = smul.addr %s191, 8
        %s193 = scalar_lea.vmem %s2, %s192
        %p194 = pneg %p92
        %p195 = pneg %p89
        %p196 = pneg %p120
        %p197 = pneg %p117
        %s198 = smul.u32 2, %s20
        %p199 = scmp.lt.s32.totalorder %s19, 1
        %s200 = scalar_select %p199, %s19, 1
        %p201 = scmp.lt.s32.totalorder %s198, 1
        %s202 = scalar_select %p201, %s198, 1
        %s203 = smul.addr %s200, 4
        %s204 = sadd.s32 %s202, %s203
        %s205 = smul.addr %s204, 8
        %s206 = scalar_lea.vmem %s3, %s205
        %s207 = smul.u32 2, %s20
        %p208 = scmp.lt.s32.totalorder %s19, 1
        %s209 = scalar_select %p208, %s19, 1
        %p210 = scmp.lt.s32.totalorder %s207, 1
        %s211 = scalar_select %p210, %s207, 1
        %s212 = smul.addr %s209, 2
        %s213 = sadd.s32 %s211, %s212
        %s214 = smul.addr %s213, 8
        %s215 = scalar_lea.vmem %s2, %s214
        %s216 = smul.u32 2, %s20
        %s217 = smul.u32 2, %s20
        %p218 = scmp.lt.s32.totalorder %s19, 1
        %s219 = scalar_select %p218, %s19, 1
        %p220 = scmp.lt.s32.totalorder %s217, 1
        %s221 = scalar_select %p220, %s217, 1
        %s222 = smul.addr %s219, 4
        %s223 = sadd.s32 %s221, %s222
        %s224 = smul.addr %s223, 8
        %s225 = scalar_lea.vmem %s3, %s224
        %s226 = smul.u32 2, %s20
        %v227 = vld [vmem:[#allocation2] sm:$0xff]
        %v228 = vld [vmem:[#allocation2 + $0x8] sm:$0xff]
        %v229 = vld [vmem:[%s215] sm:$0xff]
        %v230 = vld [vmem:[%s215 + $0x8] sm:$0xff]
        %v231 = vld [vmem:[%s1] sm:$0xff]
        %v232 = vld [vmem:[%s1 + $0x8] sm:$0xff]
        %234 = vset.pattern.permute.xlu0 0
        %235 = vperm.xlu0 %234, %v231
        %v236 = vpop.permute.xlu0 %235
        %239 = vset.pattern.permute.xlu0 0
        %240 = vperm.xlu0 %239, %v232
        %v241 = vpop.permute.xlu0 %240
        %vm243 = vcmask 64512
        %v245 = vsel %vm243, %v227, 0
        %v248 = vsel %vm243, %v228, 0
        %250 = vmatpush.msra.mxu0 0.0
        %251 = vmatpush.msra.mxu0 0.0
        %252 = vmatpush.msra.mxu0 0.0
        %253 = vmatpush.msra.mxu0 0.0
        %254 = vmatpush.msra.mxu0 0.0
        %255 = vmatpush.msra.mxu0 0.0
        %256 = vmatpush.msra.mxu0 0.0
        %257 = vmatpush.msra.mxu0 0.0
        %258 = vmatpush.msra.mxu0 0.0
        %259 = vmatpush.msra.mxu0 0.0
        %260 = vmatpush.msra.mxu0 0.0
        %261 = vmatpush.msra.mxu0 0.0
        %262 = vmatpush.msra.mxu0 0.0
        %263 = vmatpush.msra.mxu0 0.0
        %264 = vmatpush.msra.mxu0 0.0
        %265 = vmatpush.msra.mxu0 %v229
        %266 = vmatmul.f32.gmra.mxu0 %v245
        %v267 = vpop.f32.mrf.mxu0
        %v268 = vadd.f32 %v236, %v267
        %269 = vmatmul.f32.gmra.mxu0 %v248
        %v270 = vpop.f32.mrf.mxu0
        %v271 = vadd.f32 %v241, %v270
        %272 = vdwg.mxu0
        %273 = vmatpush.msra.mxu0 0.0
        %274 = vmatpush.msra.mxu0 0.0
        %275 = vmatpush.msra.mxu0 0.0
        %276 = vmatpush.msra.mxu0 0.0
        %277 = vmatpush.msra.mxu0 0.0
        %278 = vmatpush.msra.mxu0 0.0
        %279 = vmatpush.msra.mxu0 0.0
        %280 = vmatpush.msra.mxu0 0.0
        %281 = vmatpush.msra.mxu0 0.0
        %282 = vmatpush.msra.mxu0 0.0
        %283 = vmatpush.msra.mxu0 0.0
        %284 = vmatpush.msra.mxu0 0.0
        %285 = vmatpush.msra.mxu0 0.0
        %286 = vmatpush.msra.mxu0 0.0
        %287 = vmatpush.msra.mxu0 0.0
        %288 = vmatpush.msra.mxu0 %v230
        %289 = vmatmul.f32.gmra.mxu0 %v245
        %v290 = vpop.f32.mrf.mxu0
        %v291 = vadd.f32 %v236, %v290
        %292 = vmatmul.f32.gmra.mxu0 %v248
        %v293 = vpop.f32.mrf.mxu0
        %v294 = vadd.f32 %v241, %v293
        %295 = vdwg.mxu0
        %296 = vst [vmem:[%s225] sm:$0xff] %v268
        %297 = vst [vmem:[%s225 + $0x8] sm:$0xff] %v291
        %298 = vst [vmem:[%s225 + $0x10] sm:$0xff] %v271
        %299 = vst [vmem:[%s225 + $0x18] sm:$0xff] %v294
        %s300 = smul.u32 2, %s20
        %p301 = scmp.lt.s32.totalorder %s19, 1
        %s302 = scalar_select %p301, %s19, 1
        %p303 = scmp.lt.s32.totalorder %s300, 1
        %s304 = scalar_select %p303, %s300, 1
        %s305 = smul.addr %s302, 4
        %s306 = sadd.s32 %s304, %s305
        %s307 = smul.addr %s306, 8
        %s308 = scalar_lea.vmem %s3, %s307
        // Predicated region
        $region37: #{up_layer2_forward.3} parent=31 // pred_check
          %p309 = pneg %p117
        $region38: #{up_layer2_forward.3} parent=31 // pred_check_branch
          %311 = sbr.rel (%p309) target = $region40
        $region39: #{up_layer2_forward.3} parent=31 // pred_region
          %s312 = smul.u32 2, %s20
        $region40: #{up_layer2_forward.3} parent=31 // pred_fallthru
          _
      $region32: #{up_layer2_forward.3} parent=5 // pred_fallthru
        _
      %p313 = scmp.le.s32.totalorder 2, %s10
      // Predicated region
      $region41: #{up_layer2_forward.3} parent=5 // pred_check
        %p314 = pneg %p313
      $region42: #{up_layer2_forward.3} parent=5 // pred_check_branch
        %316 = sbr.rel (%p314) target = $region44
      $region43: #{up_layer2_forward.3} parent=5 // pred_region
        %s317 = ssub.s32 %s10, 2
        // Predicated region
        $region45: #{up_layer2_forward.3} parent=43 // pred_check
          %p318 = pneg %p123
        $region46: #{up_layer2_forward.3} parent=43 // pred_check_branch
          %320 = sbr.rel (%p318) target = $region48
        $region47: #{up_layer2_forward.3} parent=43 // pred_region
          %s321 = smul.u32 2, %s22
          %p322 = scmp.lt.s32.totalorder %s21, 1
          %s323 = scalar_select %p322, %s21, 1
          %p324 = scmp.lt.s32.totalorder %s321, 1
          %s325 = scalar_select %p324, %s321, 1
          %s326 = smul.addr %s323, 4
          %s327 = sadd.s32 %s325, %s326
          %s328 = smul.addr %s327, 8
          %s329 = scalar_lea.vmem %s3, %s328
        $region48: #{up_layer2_forward.3} parent=43 // pred_fallthru
          _
      $region44: #{up_layer2_forward.3} parent=5 // pred_fallthru
        _
    $region6: #{up_layer2_forward.3} parent=1 // loop_footer
      %s14 = sadd.s32 1, %s10
    $region7: #{up_layer2_forward.3} parent=1 // loop_footer_branch
      %9 = sbr.rel target = $region3
    $region8: #{up_layer2_forward.3} parent=1 // loop_exit
      _
    %330 = vsyncpa [#allocation3], 1
    %s331 = scalar_lea.sflag [#allocation3], 1
    %332 = vsyncpa %s331, 1

// kernel: up_layer2_forward.4
$region0: #{up_layer2_forward.4}
  #allocation0 [shape = 'u32[]', space=smem, size = 0x4, offset = 0x4, fixed_abs, tag = 'smem constant byte address 0x4 - core index']
  #allocation1 [shape = 'u32[72,128]{1,0:T(1,128)}', space=vmem, size = 0x9000, scoped, tag = 'internal scratch']
  %s0 = inlined_call_operand.vmem [shape: f32[2,4,1530], index: 0, kind: input, shape index: {}]
  %s1 = inlined_call_operand.vmem [shape: f32[4,4], index: 1, kind: input, shape index: {}]
  %s2 = inlined_call_operand.vmem [shape: f32[4,1], index: 2, kind: input, shape index: {}]
  %s3 = inlined_call_operand.vmem [shape: f32[4,1], index: 3, kind: input, shape index: {}]
  %s4 = inlined_call_operand.vmem [shape: f32[2,4,1530], index: 4, kind: output, shape index: {}]
  %s5 = sld [smem:[#allocation0]]
  $region49: #{up_layer2_forward.4} parent=0
    _
  %s7 = ssub.s32 1, %s5
  %s8 = scalar_select 0, %s7, %s5
  loop: start=0, step=1, limit=4
  $region2: #{up_layer2_forward.4} parent=0 // loop_pre_header
    _
  $region3: #{up_layer2_forward.4} parent=0 // loop_header
    %s10 = sphi 0, %s14
    %p11 = scmp.ge.s32.totalorder %s10, 4
    %s17 = sphi 0, %s29
    %s18 = sphi 0, %s25
    %s19 = sphi 0, %s17
    %s20 = sphi 0, %s18
    %s21 = sphi 0, %s19
    %s22 = sphi 0, %s20
    %s34 = sphi 0, %s36
    %s37 = sphi 0, %s34
    %s38 = sphi 0, %s37
    %s54 = sphi 0, %s38
    %s58 = sphi 0, %s58
    %s60 = sphi 0, %s58
    %s61 = sphi 0, %s60
    %s75 = sphi 0, %s61
    %s81 = sphi 0, %s83
    %s84 = sphi 0, %s81
    %s85 = sphi 0, %s84
    %s101 = sphi 0, %s85
    %s107 = sphi 0, %s109
    %s110 = sphi 0, %s107
    %s111 = sphi 0, %s110
    %s127 = sphi 0, %s111
    %s135 = sphi 0, %s137
    %s138 = sphi 0, %s135
    %s139 = sphi 0, %s138
    %s155 = sphi 0, %s139
  $region4: #{up_layer2_forward.4} parent=0 // loop_header_branch
    %13 = sbr.rel (%p11) target = $region8
  $region5: #{up_layer2_forward.4} parent=0 // loop_body
    %s15 = ssub.s32 %s10, 1
    %s16 = ssub.s32 %s10, 2
    %s23 = sadd.s32 1, %s18
    %p24 = scmp.ge.s32.totalorder %s23, 1
    %s25 = scalar_select %p24, 0, %s23
    %s26 = sadd.s32 1, %s17
    %s27 = scalar_select %p24, %s26, %s17
    %p28 = scmp.ge.s32.totalorder %s27, 2
    %s29 = scalar_select %p28, 0, %s27
    %s30 = ssub.s32 %s17, %s29
    %s31 = ssub.s32 %s18, %s25
    %s32 = sor.u32 %s30, %s31
    %p33 = scmp.eq.s32.totalorder %s32, 0
    %s35 = sadd.s32 %s34, 1
    %s36 = scalar_select %p33, %s34, %s35
    %p39 = pneg %p33
    %p40 = scmp.eq.s32.totalorder %s10, 1
    %p41 = por %p39, %p40
    %p42 = scmp.ne.s32.totalorder %s34, %s37
    %p43 = scmp.eq.s32.totalorder %s10, 0
    %p44 = por %p42, %p43
    %p45 = scmp.ne.s32.totalorder %s34, %s37
    %p46 = scmp.eq.s32.totalorder %s15, 1
    %p47 = por %p45, %p46
    %p48 = scmp.ne.s32.totalorder %s37, %s38
    %p49 = scmp.eq.s32.totalorder %s15, 0
    %p50 = por %p48, %p49
    %p51 = scmp.ne.s32.totalorder %s37, %s38
    %p52 = scmp.eq.s32.totalorder %s16, 1
    %p53 = por %p51, %p52
    %p55 = scmp.ne.s32.totalorder %s38, %s54
    %p56 = scmp.eq.s32.totalorder %s16, 0
    %p57 = por %p55, %p56
    %s59 = sadd.s32 %s58, 1
    %p62 = scmp.eq.s32.totalorder %s10, 1
    %p63 = scmp.ne.s32.totalorder %s58, %s60
    %p64 = scmp.eq.s32.totalorder %s10, 0
    %p65 = por %p63, %p64
    %p66 = scmp.ne.s32.totalorder %s58, %s60
    %p67 = scmp.eq.s32.totalorder %s15, 1
    %p68 = por %p66, %p67
    %p69 = scmp.ne.s32.totalorder %s60, %s61
    %p70 = scmp.eq.s32.totalorder %s15, 0
    %p71 = por %p69, %p70
    %p72 = scmp.ne.s32.totalorder %s60, %s61
    %p73 = scmp.eq.s32.totalorder %s16, 1
    %p74 = por %p72, %p73
    %p76 = scmp.ne.s32.totalorder %s61, %s75
    %p77 = scmp.eq.s32.totalorder %s16, 0
    %p78 = por %p76, %p77
    %s79 = ssub.s32 %s18, %s25
    %p80 = scmp.eq.s32.totalorder %s79, 0
    %s82 = sadd.s32 %s81, 1
    %s83 = scalar_select %p80, %s81, %s82
    %p86 = pneg %p80
    %p87 = scmp.eq.s32.totalorder %s10, 1
    %p88 = por %p86, %p87
    %p89 = scmp.ne.s32.totalorder %s81, %s84
    %p90 = scmp.eq.s32.totalorder %s10, 0
    %p91 = por %p89, %p90
    %p92 = scmp.ne.s32.totalorder %s81, %s84
    %p93 = scmp.eq.s32.totalorder %s15, 1
    %p94 = por %p92, %p93
    %p95 = scmp.ne.s32.totalorder %s84, %s85
    %p96 = scmp.eq.s32.totalorder %s15, 0
    %p97 = por %p95, %p96
    %p98 = scmp.ne.s32.totalorder %s84, %s85
    %p99 = scmp.eq.s32.totalorder %s16, 1
    %p100 = por %p98, %p99
    %p102 = scmp.ne.s32.totalorder %s85, %s101
    %p103 = scmp.eq.s32.totalorder %s16, 0
    %p104 = por %p102, %p103
    %s105 = ssub.s32 %s18, %s25
    %p106 = scmp.eq.s32.totalorder %s105, 0
    %s108 = sadd.s32 %s107, 1
    %s109 = scalar_select %p106, %s107, %s108
    %p112 = pneg %p106
    %p113 = scmp.eq.s32.totalorder %s10, 1
    %p114 = por %p112, %p113
    %p115 = scmp.ne.s32.totalorder %s107, %s110
    %p116 = scmp.eq.s32.totalorder %s10, 0
    %p117 = por %p115, %p116
    %p118 = scmp.ne.s32.totalorder %s107, %s110
    %p119 = scmp.eq.s32.totalorder %s15, 1
    %p120 = por %p118, %p119
    %p121 = scmp.ne.s32.totalorder %s110, %s111
    %p122 = scmp.eq.s32.totalorder %s15, 0
    %p123 = por %p121, %p122
    %p124 = scmp.ne.s32.totalorder %s110, %s111
    %p125 = scmp.eq.s32.totalorder %s16, 1
    %p126 = por %p124, %p125
    %p128 = scmp.ne.s32.totalorder %s111, %s127
    %p129 = scmp.eq.s32.totalorder %s16, 0
    %p130 = por %p128, %p129
    %s131 = ssub.s32 %s17, %s29
    %s132 = ssub.s32 %s18, %s25
    %s133 = sor.u32 %s131, %s132
    %p134 = scmp.eq.s32.totalorder %s133, 0
    %s136 = sadd.s32 %s135, 1
    %s137 = scalar_select %p134, %s135, %s136
    %p140 = pneg %p134
    %p141 = scmp.eq.s32.totalorder %s10, 1
    %p142 = por %p140, %p141
    %p143 = scmp.ne.s32.totalorder %s135, %s138
    %p144 = scmp.eq.s32.totalorder %s10, 0
    %p145 = por %p143, %p144
    %p146 = scmp.ne.s32.totalorder %s135, %s138
    %p147 = scmp.eq.s32.totalorder %s15, 1
    %p148 = por %p146, %p147
    %p149 = scmp.ne.s32.totalorder %s138, %s139
    %p150 = scmp.eq.s32.totalorder %s15, 0
    %p151 = por %p149, %p150
    %p152 = scmp.ne.s32.totalorder %s138, %s139
    %p153 = scmp.eq.s32.totalorder %s16, 1
    %p154 = por %p152, %p153
    %p156 = scmp.ne.s32.totalorder %s139, %s155
    %p157 = scmp.eq.s32.totalorder %s16, 0
    %p158 = por %p156, %p157
    %p159 = scmp.le.s32.totalorder 1, %s10
    %p160 = scmp.lt.s32.totalorder %s10, 3
    %p161 = pnand %p159, %p160
    %p162 = pneg %p161
    // Predicated region
    $region9: #{up_layer2_forward.4} parent=5 // pred_check
      _
    $region10: #{up_layer2_forward.4} parent=5 // pred_check_branch
      %164 = sbr.rel (%p161) target = $region12
    $region11: #{up_layer2_forward.4} parent=5 // pred_region
      %s165 = ssub.s32 %s10, 1
      // Predicated region
      $region13: #{up_layer2_forward.4} parent=11 // pred_check
        %p166 = pneg %p71
      $region14: #{up_layer2_forward.4} parent=11 // pred_check_branch
        %168 = sbr.rel (%p166) target = $region16
      $region15: #{up_layer2_forward.4} parent=11 // pred_region
        _
      $region16: #{up_layer2_forward.4} parent=11 // pred_fallthru
        _
      // Predicated region
      $region17: #{up_layer2_forward.4} parent=11 // pred_check
        %p169 = pneg %p97
      $region18: #{up_layer2_forward.4} parent=11 // pred_check_branch
        %171 = sbr.rel (%p169) target = $region20
      $region19: #{up_layer2_forward.4} parent=11 // pred_region
        %p172 = scmp.lt.s32.totalorder %s20, 0
        %s173 = scalar_select %p172, %s20, 0
        %s174 = smul.addr %s173, 4
        %s175 = scalar_lea.vmem %s2, %s174
      $region20: #{up_layer2_forward.4} parent=11 // pred_fallthru
        _
      // Predicated region
      $region21: #{up_layer2_forward.4} parent=11 // pred_check
        %p176 = pneg %p123
      $region22: #{up_layer2_forward.4} parent=11 // pred_check_branch
        %178 = sbr.rel (%p176) target = $region24
      $region23: #{up_layer2_forward.4} parent=11 // pred_region
        %p179 = scmp.lt.s32.totalorder %s20, 0
        %s180 = scalar_select %p179, %s20, 0
        %s181 = smul.addr %s180, 4
        %s182 = scalar_lea.vmem %s3, %s181
      $region24: #{up_layer2_forward.4} parent=11 // pred_fallthru
        _
    $region12: #{up_layer2_forward.4} parent=5 // pred_fallthru
      _
    %p183 = scmp.lt.s32.totalorder %s10, 2
    // Predicated region
    $region25: #{up_layer2_forward.4} parent=5 // pred_check
      %p184 = pneg %p183
    $region26: #{up_layer2_forward.4} parent=5 // pred_check_branch
      %186 = sbr.rel (%p184) target = $region28
    $region27: #{up_layer2_forward.4} parent=5 // pred_region
      // Predicated region
      $region29: #{up_layer2_forward.4} parent=27 // pred_check
        %p187 = pneg %p44
      $region30: #{up_layer2_forward.4} parent=27 // pred_check_branch
        %189 = sbr.rel (%p187) target = $region32
      $region31: #{up_layer2_forward.4} parent=27 // pred_region
        %p190 = scmp.lt.s32.totalorder %s17, 1
        %s191 = scalar_select %p190, %s17, 1
        %p192 = scmp.lt.s32.totalorder %s18, 0
        %s193 = scalar_select %p192, %s18, 0
        %s194 = smul.addr %s193, 12
        %s195 = smul.addr %s191, 12
        %s196 = sadd.s32 %s194, %s195
        %s197 = smul.addr %s196, 4
        %s198 = scalar_lea.vmem %s0, %s197
      $region32: #{up_layer2_forward.4} parent=27 // pred_fallthru
        _
    $region28: #{up_layer2_forward.4} parent=5 // pred_fallthru
      _
    %p199 = scmp.le.s32.totalorder 1, %s10
    %p200 = scmp.lt.s32.totalorder %s10, 3
    %p201 = pnand %p199, %p200
    %p202 = pneg %p201
    // Predicated region
    $region33: #{up_layer2_forward.4} parent=5 // pred_check
      _
    $region34: #{up_layer2_forward.4} parent=5 // pred_check_branch
      %204 = sbr.rel (%p201) target = $region36
    $region35: #{up_layer2_forward.4} parent=5 // pred_region
      %s205 = ssub.s32 %s10, 1
      %p206 = scmp.lt.s32.totalorder %s19, 1
      %s207 = scalar_select %p206, %s19, 1
      %p208 = scmp.lt.s32.totalorder %s20, 0
      %s209 = scalar_select %p208, %s20, 0
      %s210 = smul.addr %s209, 12
      %s211 = smul.addr %s207, 12
      %s212 = sadd.s32 %s210, %s211
      %s213 = smul.addr %s212, 4
      %s214 = scalar_lea.vmem %s0, %s213
      %p215 = pneg %p50
      %p216 = pneg %p47
      %p217 = pneg %p71
      %p218 = pneg %p68
      %p219 = scmp.lt.s32.totalorder %s20, 0
      %s220 = scalar_select %p219, %s20, 0
      %s221 = smul.addr %s220, 4
      %s222 = scalar_lea.vmem %s2, %s221
      %p223 = pneg %p97
      %p224 = pneg %p94
      %p225 = scmp.lt.s32.totalorder %s20, 0
      %s226 = scalar_select %p225, %s20, 0
      %s227 = smul.addr %s226, 4
      %s228 = scalar_lea.vmem %s3, %s227
      %p229 = pneg %p123
      %p230 = pneg %p120
      %p231 = pneg %p151
      %p232 = pneg %p148
      %p233 = scmp.lt.s32.totalorder %s19, 1
      %s234 = scalar_select %p233, %s19, 1
      %p235 = scmp.lt.s32.totalorder %s20, 0
      %s236 = scalar_select %p235, %s20, 0
      %s237 = smul.addr %s236, 12
      %s238 = smul.addr %s234, 12
      %s239 = sadd.s32 %s237, %s238
      %s240 = smul.addr %s239, 4
      %s241 = scalar_lea.vmem %s4, %s240
      %p242 = scmp.lt.s32.totalorder %s19, 1
      %s243 = scalar_select %p242, %s19, 1
      %p244 = scmp.lt.s32.totalorder %s20, 0
      %s245 = scalar_select %p244, %s20, 0
      %s246 = smul.addr %s245, 12
      %s247 = smul.addr %s243, 12
      %s248 = sadd.s32 %s246, %s247
      %s249 = smul.addr %s248, 4
      %s250 = scalar_lea.vmem %s0, %s249
      %p251 = scmp.lt.s32.totalorder %s20, 0
      %s252 = scalar_select %p251, %s20, 0
      %s253 = smul.addr %s252, 4
      %s254 = scalar_lea.vmem %s2, %s253
      %p255 = scmp.lt.s32.totalorder %s20, 0
      %s256 = scalar_select %p255, %s20, 0
      %s257 = smul.addr %s256, 4
      %s258 = scalar_lea.vmem %s3, %s257
      %p259 = scmp.lt.s32.totalorder %s19, 1
      %s260 = scalar_select %p259, %s19, 1
      %p261 = scmp.lt.s32.totalorder %s20, 0
      %s262 = scalar_select %p261, %s20, 0
      %s263 = smul.addr %s262, 12
      %s264 = smul.addr %s260, 12
      %s265 = sadd.s32 %s263, %s264
      %s266 = smul.addr %s265, 4
      %s267 = scalar_lea.vmem %s4, %s266
      %v268 = vld [vmem:[%s250] sm:$0xff]
      %v269 = vld [vmem:[%s250 + $0x8] sm:$0xff]
      %v270 = vld [vmem:[%s250 + $0x10] sm:$0xff]
      %v271 = vld [vmem:[%s250 + $0x18] sm:$0xff]
      %v272 = vld [vmem:[%s250 + $0x20] sm:$0xff]
      %v273 = vld [vmem:[%s250 + $0x28] sm:$0xff]
      %280 = vst [vmem:[#allocation1] ss:$2 sm:$0xff] %v268
      %s281 = scalar_lea.vmem [#allocation1], 16
      %282 = vst [vmem:[%s281] ss:$2 sm:$0xff] %v269
      %s283 = scalar_lea.vmem [#allocation1], 32
      %284 = vst [vmem:[%s283] ss:$2 sm:$0xff] %v270
      %s285 = scalar_lea.vmem [#allocation1], 48
      %286 = vst [vmem:[%s285] ss:$2 sm:$0xff] %v271
      %v287 = vld.sshfl [vmem:[#allocation1] sm:$0xff pattern:$0x75316420]
      %v288 = vld.sshfl [vmem:[#allocation1 + $0x8] sm:$0xff pattern:$0x75316420]
      %v289 = vld.sshfl [vmem:[#allocation1 + $0x10] sm:$0xff pattern:$0x75316420]
      %v290 = vld.sshfl [vmem:[#allocation1 + $0x18] sm:$0xff pattern:$0x75316420]
      %v291 = vld.sshfl [vmem:[#allocation1 + $0x20] sm:$0xff pattern:$0x75316420]
      %v292 = vld.sshfl [vmem:[#allocation1 + $0x28] sm:$0xff pattern:$0x75316420]
      %v293 = vld.sshfl [vmem:[#allocation1 + $0x30] sm:$0xff pattern:$0x75316420]
      %v294 = vld.sshfl [vmem:[#allocation1 + $0x38] sm:$0xff pattern:$0x75316420]
      %295 = vst [vmem:[#allocation1] ss:$2 sm:$0xff] %v272
      %296 = vst [vmem:[%s281] ss:$2 sm:$0xff] %v273
      %v297 = vld.sshfl [vmem:[#allocation1] sm:$0xff pattern:$0x75316420]
      %v298 = vld.sshfl [vmem:[#allocation1 + $0x8] sm:$0xff pattern:$0x75316420]
      %v299 = vld.sshfl [vmem:[#allocation1 + $0x10] sm:$0xff pattern:$0x75316420]
      %v300 = vld.sshfl [vmem:[#allocation1 + $0x18] sm:$0xff pattern:$0x75316420]
      %vm313 = vcmask 1043456
      %v314 = vsel %vm313, %v287, 0.0
      %v315 = vsel %vm313, %v288, 0.0
      %v316 = vadd.f32 %v314, %v315
      %v317 = vsel %vm313, %v289, 0.0
      %v318 = vadd.f32 %v316, %v317
      %v319 = vsel %vm313, %v290, 0.0
      %v320 = vadd.f32 %v318, %v319
      %v321 = vsel %vm313, %v291, 0.0
      %v322 = vadd.f32 %v320, %v321
      %v323 = vsel %vm313, %v292, 0.0
      %v324 = vadd.f32 %v322, %v323
      %v325 = vsel %vm313, %v293, 0.0
      %v326 = vadd.f32 %v324, %v325
      %v327 = vsel %vm313, %v294, 0.0
      %v328 = vadd.f32 %v326, %v327
      %v329 = vsel %vm313, %v297, 0.0
      %v330 = vadd.f32 %v328, %v329
      %v331 = vsel %vm313, %v298, 0.0
      %v332 = vadd.f32 %v330, %v331
      %v333 = vsel %vm313, %v299, 0.0
      %v334 = vadd.f32 %v332, %v333
      %vm335 = vcmask 994304
      %v336 = vsel %vm335, %v300, 0.0
      %v337 = vadd.f32 %v334, %v336
      %338 = vadd.xlane.f32.xlu0 %v337
      %v339 = vpop.xlane.xlu0 %338
      %v340 = vmul.f32 %v339, 0.0006535948
      %v343 = vunpack.c.l.s4 839922192
      %v344 = vunpack.c.0.s8 %v343
      %v345 = vperm.slane %v340, %v344
      %v347 = vsub.f32 %v268, %v345
      %v348 = vsub.f32 %v269, %v345
      %v349 = vsub.f32 %v270, %v345
      %v350 = vsub.f32 %v271, %v345
      %v351 = vsub.f32 %v272, %v345
      %v352 = vsub.f32 %v273, %v345
      %v353 = vmul.f32 %v347, %v347
      %v354 = vmul.f32 %v348, %v348
      %v355 = vmul.f32 %v349, %v349
      %v356 = vmul.f32 %v350, %v350
      %v357 = vmul.f32 %v351, %v351
      %v358 = vmul.f32 %v352, %v352
      %365 = vst [vmem:[#allocation1] ss:$2 sm:$0xff] %v353
      %s366 = scalar_lea.vmem [#allocation1], 16
      %367 = vst [vmem:[%s366] ss:$2 sm:$0xff] %v354
      %s368 = scalar_lea.vmem [#allocation1], 32
      %369 = vst [vmem:[%s368] ss:$2 sm:$0xff] %v355
      %s370 = scalar_lea.vmem [#allocation1], 48
      %371 = vst [vmem:[%s370] ss:$2 sm:$0xff] %v356
      %v372 = vld.sshfl [vmem:[#allocation1] sm:$0xff pattern:$0x75316420]
      %v373 = vld.sshfl [vmem:[#allocation1 + $0x8] sm:$0xff pattern:$0x75316420]
      %v374 = vld.sshfl [vmem:[#allocation1 + $0x10] sm:$0xff pattern:$0x75316420]
      %v375 = vld.sshfl [vmem:[#allocation1 + $0x18] sm:$0xff pattern:$0x75316420]
      %v376 = vld.sshfl [vmem:[#allocation1 + $0x20] sm:$0xff pattern:$0x75316420]
      %v377 = vld.sshfl [vmem:[#allocation1 + $0x28] sm:$0xff pattern:$0x75316420]
      %v378 = vld.sshfl [vmem:[#allocation1 + $0x30] sm:$0xff pattern:$0x75316420]
      %v379 = vld.sshfl [vmem:[#allocation1 + $0x38] sm:$0xff pattern:$0x75316420]
      %380 = vst [vmem:[#allocation1] ss:$2 sm:$0xff] %v357
      %381 = vst [vmem:[%s366] ss:$2 sm:$0xff] %v358
      %v382 = vld.sshfl [vmem:[#allocation1] sm:$0xff pattern:$0x75316420]
      %v383 = vld.sshfl [vmem:[#allocation1 + $0x8] sm:$0xff pattern:$0x75316420]
      %v384 = vld.sshfl [vmem:[#allocation1 + $0x10] sm:$0xff pattern:$0x75316420]
      %v385 = vld.sshfl [vmem:[#allocation1 + $0x18] sm:$0xff pattern:$0x75316420]
      %v398 = vsel %vm313, %v372, 0.0
      %v399 = vsel %vm313, %v373, 0.0
      %v400 = vadd.f32 %v398, %v399
      %v401 = vsel %vm313, %v374, 0.0
      %v402 = vadd.f32 %v400, %v401
      %v403 = vsel %vm313, %v375, 0.0
      %v404 = vadd.f32 %v402, %v403
      %v405 = vsel %vm313, %v376, 0.0
      %v406 = vadd.f32 %v404, %v405
      %v407 = vsel %vm313, %v377, 0.0
      %v408 = vadd.f32 %v406, %v407
      %v409 = vsel %vm313, %v378, 0.0
      %v410 = vadd.f32 %v408, %v409
      %v411 = vsel %vm313, %v379, 0.0
      %v412 = vadd.f32 %v410, %v411
      %v413 = vsel %vm313, %v382, 0.0
      %v414 = vadd.f32 %v412, %v413
      %v415 = vsel %vm313, %v383, 0.0
      %v416 = vadd.f32 %v414, %v415
      %v417 = vsel %vm313, %v384, 0.0
      %v418 = vadd.f32 %v416, %v417
      %v419 = vsel %vm335, %v385, 0.0
      %v420 = vadd.f32 %v418, %v419
      %421 = vadd.xlane.f32.xlu0 %v420
      %v422 = vpop.xlane.xlu0 %421
      %v423 = vmul.f32 %v422, 0.0006535948
      %v424 = vadd.f32 %v423, 1e-05
      %v425 = vrsqrt.pop %v424
      %v426 = vmul.f32 %v425, %v424
      %v427 = vmul.f32 %v426, %v425
      %v428 = vmul.f32 0.5, %v427
      %v429 = vsub.f32 1.5, %v428
      %v430 = vmul.f32 %v425, %v429
      %vm431 = vweird.f32 %v424
      %vm432 = vweird.f32 %v425
      %vm433 = vmor %vm431, %vm432
      %v434 = vsel %vm433, %v425, %v430
      %v435 = vld [vmem:[%s254] sm:$0xf]
      %v436 = vmul.f32 %v434, %v435
      %438 = vset.pattern.permute.xlu0 0
      %439 = vperm.xlu0 %438, %v436
      %v440 = vpop.permute.xlu0 %439
      %v442 = vunpack.c.l.s4 839922192
      %v443 = vunpack.c.0.s8 %v442
      %v444 = vperm.slane %v440, %v443
      %v446 = vmul.f32 %v347, %v444
      %v447 = vmul.f32 %v348, %v444
      %v448 = vmul.f32 %v349, %v444
      %v449 = vmul.f32 %v350, %v444
      %v450 = vmul.f32 %v351, %v444
      %v451 = vmul.f32 %v352, %v444
      %v452 = vld [vmem:[%s258] sm:$0xf]
      %454 = vset.pattern.permute.xlu0 0
      %455 = vperm.xlu0 %454, %v452
      %v456 = vpop.permute.xlu0 %455
      %v458 = vunpack.c.l.s4 839922192
      %v459 = vunpack.c.0.s8 %v458
      %v460 = vperm.slane %v456, %v459
      %v462 = vadd.f32 %v446, %v460
      %v463 = vadd.f32 %v447, %v460
      %v464 = vadd.f32 %v448, %v460
      %v465 = vadd.f32 %v449, %v460
      %v466 = vadd.f32 %v450, %v460
      %v467 = vadd.f32 %v451, %v460
      %v468 = vmax.f32 %v462, 0.0
      %v469 = vmax.f32 %v463, 0.0
      %v470 = vmax.f32 %v464, 0.0
      %v471 = vmax.f32 %v465, 0.0
      %v472 = vmax.f32 %v466, 0.0
      %v473 = vmax.f32 %v467, 0.0
      %474 = vst [vmem:[%s267] sm:$0xff] %v468
      %475 = vst [vmem:[%s267 + $0x8] sm:$0xff] %v469
      %476 = vst [vmem:[%s267 + $0x10] sm:$0xff] %v470
      %477 = vst [vmem:[%s267 + $0x18] sm:$0xff] %v471
      %478 = vst [vmem:[%s267 + $0x20] sm:$0xff] %v472
      %vm479 = vcmask 998404
      %vm480 = vmor %vm479, %vm313
      %481 = vst.msk [vmem:[%s267 + $0x28] sm:$0xff] %vm480, %v473
      %p482 = scmp.lt.s32.totalorder %s19, 1
      %s483 = scalar_select %p482, %s19, 1
      %p484 = scmp.lt.s32.totalorder %s20, 0
      %s485 = scalar_select %p484, %s20, 0
      %s486 = smul.addr %s485, 12
      %s487 = smul.addr %s483, 12
      %s488 = sadd.s32 %s486, %s487
      %s489 = smul.addr %s488, 4
      %s490 = scalar_lea.vmem %s4, %s489
      // Predicated region
      $region37: #{up_layer2_forward.4} parent=35 // pred_check
        %p491 = pneg %p148
      $region38: #{up_layer2_forward.4} parent=35 // pred_check_branch
        %493 = sbr.rel (%p491) target = $region40
      $region39: #{up_layer2_forward.4} parent=35 // pred_region
        _
      $region40: #{up_layer2_forward.4} parent=35 // pred_fallthru
        _
    $region36: #{up_layer2_forward.4} parent=5 // pred_fallthru
      _
    %p494 = scmp.le.s32.totalorder 2, %s10
    // Predicated region
    $region41: #{up_layer2_forward.4} parent=5 // pred_check
      %p495 = pneg %p494
    $region42: #{up_layer2_forward.4} parent=5 // pred_check_branch
      %497 = sbr.rel (%p495) target = $region44
    $region43: #{up_layer2_forward.4} parent=5 // pred_region
      %s498 = ssub.s32 %s10, 2
      // Predicated region
      $region45: #{up_layer2_forward.4} parent=43 // pred_check
        %p499 = pneg %p154
      $region46: #{up_layer2_forward.4} parent=43 // pred_check_branch
        %501 = sbr.rel (%p499) target = $region48
      $region47: #{up_layer2_forward.4} parent=43 // pred_region
        %p502 = scmp.lt.s32.totalorder %s21, 1
        %s503 = scalar_select %p502, %s21, 1
        %p504 = scmp.lt.s32.totalorder %s22, 0
        %s505 = scalar_select %p504, %s22, 0
        %s506 = smul.addr %s505, 12
        %s507 = smul.addr %s503, 12
        %s508 = sadd.s32 %s506, %s507
        %s509 = smul.addr %s508, 4
        %s510 = scalar_lea.vmem %s4, %s509
      $region48: #{up_layer2_forward.4} parent=43 // pred_fallthru
        _
    $region44: #{up_layer2_forward.4} parent=5 // pred_fallthru
      _
  $region6: #{up_layer2_forward.4} parent=0 // loop_footer
    %s14 = sadd.s32 1, %s10
  $region7: #{up_layer2_forward.4} parent=0 // loop_footer_branch
    %9 = sbr.rel target = $region3
  $region8: #{up_layer2_forward.4} parent=0 // loop_exit
    _

</llo_original>
